<compile_context>
chip_gen: v5e
topology: v5e:2x2
jax: 0.10.0
libtpu: 0.0.40
codegen_flags: <defaults>
</compile_context>

<pallas_src>
import functools

import jax
import jax.numpy as jnp
import numpy as np
from jax.experimental import pallas as pl
from jax.experimental.pallas import tpu as pltpu


# ----------------------------------------------------------------------------
# Chip-aware configuration (v5e / v6e / v7x tiling + VMEM budgets).
# ----------------------------------------------------------------------------
def _chip_config():
    try:
        kind = jax.devices()[0].device_kind.lower()
    except Exception:  # defensive: interpret mode / unusual backends
        kind = ""
    if "v7" in kind or "7x" in kind:
        # 2 TensorCores/chip, only 64 MiB physical VMEM -> conservative budget.
        return dict(name="v7x", num_tc=2, vmem_limit=32 * 1024 * 1024,
                    x_tile_bytes=int(1.5 * 1024 * 1024), bf16_valu=True)
    if "v6" in kind:
        return dict(name="v6e", num_tc=1, vmem_limit=64 * 1024 * 1024,
                    x_tile_bytes=4 * 1024 * 1024, bf16_valu=True)
    if "v5" in kind:
        # v5e/v5p: 128 MiB VMEM; raise the 16/32 MiB scoped default. No bf16 VALU on v5e.
        return dict(name="v5", num_tc=1, vmem_limit=64 * 1024 * 1024,
                    x_tile_bytes=4 * 1024 * 1024, bf16_valu=False)
    # Unknown generation: most conservative (v7x-like) budget.
    return dict(name="unknown", num_tc=1, vmem_limit=32 * 1024 * 1024,
                x_tile_bytes=int(1.5 * 1024 * 1024), bf16_valu=False)


def _sublane(dtype):
    """Sublane packing of the second-minor dim for this dtype (8/16/32 rows)."""
    return {4: 8, 2: 16, 1: 32}.get(jnp.dtype(dtype).itemsize, 8)


def _pick_batch_tile(batch, x_row_bytes, vmem_row_bytes, sublane, cfg):
    """Rows of x per grid step.

    Big enough to amortize the ~0.35us fixed per-grid-step overhead, small
    enough that (a) the double-buffered in/out tiles plus the tile-sized f32
    temporaries stay well inside the scoped VMEM limit and (b) on multi-core
    chips (v7x) there are >= 2 grid steps per TensorCore so the "parallel"
    batch axis can be split across cores.
    """
    bt = max(1, cfg["x_tile_bytes"] // max(int(x_row_bytes), 1))
    # Full per-row VMEM footprint kept under ~half the scoped limit for headroom.
    bt = min(bt, max(1, (cfg["vmem_limit"] // 2) // max(int(vmem_row_bytes), 1)))
    min_steps = 2 * cfg["num_tc"] if cfg["num_tc"] > 1 else 1
    if min_steps > 1 and batch >= min_steps * sublane:
        bt = min(bt, pl.cdiv(batch, min_steps))
    if bt >= batch:
        return batch                                  # whole batch in one block
    return max(sublane, (bt // sublane) * sublane)    # partial blocks: sublane-aligned


# ----------------------------------------------------------------------------
# Kernels.
# ----------------------------------------------------------------------------
def _se_kernel_flat(x_ref, pool_ref, w1_ref, b1_ref, w2_ref, b2_ref, rep_ref,
                    out_ref, scale_ref, *, excite_low_precision):
    """One batch tile, flattened lane-dense (Bt, F*C) layout (small C).

    x_ref:     (Bt, F*C)  flattened input tile
    pool_ref:  (F*C, C)   constant, pool_ref[f*C + c, c] = 1/F   (mean over F)
    w1_ref:    (C, mid)   fc_1.weight.T       b1_ref: (1, mid)
    w2_ref:    (mid, C)   fc_2.weight.T       b2_ref: (1, C)
    rep_ref:   (C, F*C)   constant, rep_ref[c, f*C + c] = 1      (broadcast over F)
    out_ref:   (Bt, F*C)  excited output tile (lane-dense store)
    scale_ref: (Bt, C)    per-channel scales
    """
    x = x_ref[...]
    x_f32 = x.astype(jnp.float32)                                              # (Bt, F*C)

    # Mean over features as a matmul against a constant (1/F baked in -> no
    # in-kernel divide on the VALU slot; MXU slot is otherwise idle here).
    pooled = jnp.dot(x_f32, pool_ref[...], preferred_element_type=jnp.float32)  # (Bt, C)

    h = jnp.dot(pooled, w1_ref[...], preferred_element_type=jnp.float32) + b1_ref[...]
    h = jnp.maximum(h, 0.0)                                                    # (Bt, mid)

    s = jnp.dot(h, w2_ref[...], preferred_element_type=jnp.float32) + b2_ref[...]
    s = jax.nn.sigmoid(s)                                                      # (Bt, C)

    # Broadcast per-channel scale across features on the flattened layout:
    # s_rep[b, f*C + c] = s[b, c].
    s_rep = jnp.dot(s, rep_ref[...], preferred_element_type=jnp.float32)       # (Bt, F*C)

    if excite_low_precision:
        # bf16 VALU available (v6e/v7x): large elementwise multiply in bf16
        # halves the tile-sized temporaries' vreg/VMEM pressure.
        out_ref[...] = (x * s_rep.astype(x.dtype)).astype(out_ref.dtype)
    else:
        out_ref[...] = (x_f32 * s_rep).astype(out_ref.dtype)
    scale_ref[...] = s.astype(scale_ref.dtype)


def _se_kernel_3d(x_ref, w1_ref, b1_ref, w2_ref, b2_ref,
                  out_ref, scale_ref, *, excite_low_precision, inv_f):
    """One batch tile, natural (Bt, F, C) layout (wide channels: lane axis = C)."""
    x = x_ref[...]
    x_f32 = x.astype(jnp.float32)                        # (Bt, F, C)
    pooled = jnp.sum(x_f32, axis=1) * inv_f              # (Bt, C): mean over features
    h = jnp.maximum(
        jnp.dot(pooled, w1_ref[...], preferred_element_type=jnp.float32) + b1_ref[...],
        0.0)
    s = jax.nn.sigmoid(
        jnp.dot(h, w2_ref[...], preferred_element_type=jnp.float32) + b2_ref[...])
    if excite_low_precision:
        out_ref[...] = (x * s[:, None, :].astype(x.dtype)).astype(out_ref.dtype)
    else:
        out_ref[...] = (x_f32 * s[:, None, :]).astype(out_ref.dtype)
    scale_ref[...] = s.astype(scale_ref.dtype)


# ----------------------------------------------------------------------------
# Wrapper.
# ----------------------------------------------------------------------------
def se_block(x, w1, b1, w2, b2):
    """x: (B, F, C); w1: (C, mid); b1: (1, mid); w2: (mid, C); b2: (1, C).

    Returns (out (B, F, C), scale (B, C)) -- matches SEBlock.forward.
    """
    B, F, C = x.shape
    mid = w1.shape[1]
    FC = F * C
    itemsize = jnp.dtype(x.dtype).itemsize
    cfg = _chip_config()
    sublane = _sublane(x.dtype)
    excite_low_precision = bool(
        cfg["bf16_valu"] and jnp.dtype(x.dtype) == jnp.dtype(jnp.bfloat16))

    const2d = lambda i: (0, 0)   # weights/constants: same block every step -> one DMA

    # Per-row VMEM footprint: double-buffered in + out tiles plus ~3 tile-sized
    # temporaries inside the kernel (upcast x, replicated scale, product).
    tmp_item = 2 if excite_low_precision else 4
    vmem_row_bytes = 2 * FC * itemsize + 2 * FC * itemsize + 3 * FC * tmp_item
    bt = _pick_batch_tile(B, FC * itemsize, vmem_row_bytes, sublane, cfg)
    grid = (pl.cdiv(B, bt),)

    compiler_params = pltpu.CompilerParams(
        dimension_semantics=("parallel",),       # batch tiles may split across TCs
        vmem_limit_bytes=cfg["vmem_limit"],
    )

    w_bytes = (w1.size + b1.size + w2.size + b2.size) * jnp.dtype(w1.dtype).itemsize

    # Size guard for the flattened constant-matmul trick: O(F*C*C) constants
    # are only affordable (and only useful) for small channel counts.
    const_mat_bytes = 2 * FC * C * 4
    use_flat = (C < 128) and (const_mat_bytes <= (2 << 20))

    if use_flat:
        # Lane-dense layout plumbing: fold (F, C) into one trailing axis of
        # width F*C (wrapper-side reshape only; no in-kernel reshape).
        x2d = x.reshape(B, FC)
        eye = jnp.eye(C, dtype=jnp.float32)
        pool_mat = jnp.tile(eye, (F, 1)) * (1.0 / F)    # (F*C, C): mean over features
        rep_mat = jnp.tile(eye, (1, F))                 # (C, F*C): replicate scale over F

        cost = pl.CostEstimate(
            flops=(2 * B * FC * C + 2 * B * C * mid + 2 * B * mid * C
                   + 2 * B * C * FC + B * FC),
            transcendentals=B * C,
            bytes_accessed=(2 * B * FC * itemsize + B * C * itemsize
                            + w_bytes + const_mat_bytes),
        )

        out2d, scale = pl.pallas_call(
            functools.partial(_se_kernel_flat,
                              excite_low_precision=excite_low_precision),
            out_shape=(jax.ShapeDtypeStruct((B, FC), x.dtype),
                       jax.ShapeDtypeStruct((B, C), x.dtype)),
            grid_spec=pltpu.PrefetchScalarGridSpec(
                num_scalar_prefetch=0,
                grid=grid,
                in_specs=[
                    pl.BlockSpec((bt, FC), lambda i: (i, 0)),   # x tile (lane-dense)
                    pl.BlockSpec((FC, C), const2d),             # pooling matrix
                    pl.BlockSpec((C, mid), const2d),            # w1
                    pl.BlockSpec((1, mid), const2d),            # b1
                    pl.BlockSpec((mid, C), const2d),            # w2
                    pl.BlockSpec((1, C), const2d),              # b2
                    pl.BlockSpec((C, FC), const2d),             # replication matrix
                ],
                out_specs=[
                    pl.BlockSpec((bt, FC), lambda i: (i, 0)),   # out tile (lane-dense)
                    pl.BlockSpec((bt, C), lambda i: (i, 0)),    # per-channel scales
                ],
            ),
            compiler_params=compiler_params,
            cost_estimate=cost,
        )(x2d, pool_mat, w1, b1, w2, b2, rep_mat)
        return out2d.reshape(B, F, C), scale

    # Wide-channel path: natural (Bt, F, C) blocks (lane axis C already dense).
    cost = pl.CostEstimate(
        flops=B * FC + 2 * B * C * mid + 2 * B * mid * C + B * FC,
        transcendentals=B * C,
        bytes_accessed=2 * B * FC * itemsize + B * C * itemsize + w_bytes,
    )
    out, scale = pl.pallas_call(
        functools.partial(_se_kernel_3d,
                          excite_low_precision=excite_low_precision,
                          inv_f=1.0 / F),
        out_shape=(jax.ShapeDtypeStruct((B, F, C), x.dtype),
                   jax.ShapeDtypeStruct((B, C), x.dtype)),
        grid_spec=pltpu.PrefetchScalarGridSpec(
            num_scalar_prefetch=0,
            grid=grid,
            in_specs=[
                pl.BlockSpec((bt, F, C), lambda i: (i, 0, 0)),  # x tile
                pl.BlockSpec((C, mid), const2d),                # w1
                pl.BlockSpec((1, mid), const2d),                # b1
                pl.BlockSpec((mid, C), const2d),                # w2
                pl.BlockSpec((1, C), const2d),                  # b2
            ],
            out_specs=[
                pl.BlockSpec((bt, F, C), lambda i: (i, 0, 0)),  # out tile
                pl.BlockSpec((bt, C), lambda i: (i, 0)),        # per-channel scales
            ],
        ),
        compiler_params=compiler_params,
        cost_estimate=cost,
    )(x, w1, b1, w2, b2)
    return out, scale


# ----------------------------------------------------------------------------
# Reference (numpy float64 -> unambiguous ground truth) and self-test.
# ----------------------------------------------------------------------------
def _reference(x, w1, b1, w2, b2):
    x64 = np.asarray(x, np.float64)
    w1_, b1_, w2_, b2_ = (np.asarray(a, np.float64) for a in (w1, b1, w2, b2))
    pooled = x64.mean(axis=1, keepdims=True)           # (B, 1, C)
    h = np.maximum(pooled @ w1_ + b1_, 0.0)            # (B, 1, mid)
    s = 1.0 / (1.0 + np.exp(-(h @ w2_ + b2_)))         # (B, 1, C)
    return x64 * s, np.squeeze(s, axis=1)


def _make_params(key, C, mid, dtype=jnp.float32):
    k1, k2, k3, k4 = jax.random.split(key, 4)
    # PyTorch Linear weight is (out, in); pre-transposed so the kernel does x @ W.
    w1 = jax.random.normal(k1, (C, mid), dtype) * 0.1    # fc_1.weight.T
    b1 = jax.random.normal(k2, (1, mid), dtype) * 0.1    # fc_1.bias
    w2 = jax.random.normal(k3, (mid, C), dtype) * 0.1    # fc_2.weight.T
    b2 = jax.random.normal(k4, (1, C), dtype) * 0.1      # fc_2.bias
    return w1, b1, w2, b2


if __name__ == "__main__":
    key = jax.random.PRNGKey(0)
    kx1, kp1, kx2, kp2 = jax.random.split(key, 4)

    # Tolerance covers MXU f32 multi-pass rounding vs the float64 reference
    # while still catching any real bug (those produce O(0.1+) errors).
    ATOL = RTOL = 1e-3

    # Case 1: module config (nb_channels=8, nb_features=16, ratio=0.5 -> mid=4).
    # Exercises the flattened lane-dense path.
    B, F, C = 2, 16, 8
    mid = int(C * 0.5)
    x = jax.random.normal(kx1, (B, F, C), dtype=jnp.float32)
    w1, b1, w2, b2 = _make_params(kp1, C, mid)
    out, scale = se_block(x, w1, b1, w2, b2)
    out, scale = jax.block_until_ready(out), jax.block_until_ready(scale)
    ref_out, ref_scale = _reference(x, w1, b1, w2, b2)
    assert out.shape == (B, F, C) and scale.shape == (B, C)
    assert np.allclose(np.asarray(out, np.float64), ref_out, atol=ATOL, rtol=RTOL)
    assert np.allclose(np.asarray(scale, np.float64), ref_scale, atol=ATOL, rtol=RTOL)

    # Case 2: wide-channel config -> exercises the natural (Bt, F, C) path.
    B2, F2, C2 = 2, 8, 128
    mid2 = int(C2 * 0.5)
    x2 = jax.random.normal(kx2, (B2, F2, C2), dtype=jnp.float32)
    p2 = _make_params(kp2, C2, mid2)
    out2, scale2 = se_block(x2, *p2)
    out2, scale2 = jax.block_until_ready(out2), jax.block_until_ready(scale2)
    ro2, rs2 = _reference(x2, *p2)
    assert out2.shape == (B2, F2, C2) and scale2.shape == (B2, C2)
    assert np.allclose(np.asarray(out2, np.float64), ro2, atol=ATOL, rtol=RTOL)
    assert np.allclose(np.asarray(scale2, np.float64), rs2, atol=ATOL, rtol=RTOL)

    print("KERNEL_OK")
</pallas_src>

<mosaic_0001>
module attributes {stable_mosaic.version = 11 : i64} {
  func.func @_se_kernel_flat(%arg0: i32, %arg1: memref<2x128xf32, #tpu.memory_space<vmem>>, %arg2: memref<128x8xf32, #tpu.memory_space<vmem>>, %arg3: memref<8x4xf32, #tpu.memory_space<vmem>>, %arg4: memref<1x4xf32, #tpu.memory_space<vmem>>, %arg5: memref<4x8xf32, #tpu.memory_space<vmem>>, %arg6: memref<1x8xf32, #tpu.memory_space<vmem>>, %arg7: memref<8x128xf32, #tpu.memory_space<vmem>>, %arg8: memref<2x128xf32, #tpu.memory_space<vmem>>, %arg9: memref<2x8xf32, #tpu.memory_space<vmem>>) attributes {dimension_semantics = [#tpu.dimension_semantics<parallel>], iteration_bounds = array<i64: 1>, scalar_prefetch = 0 : i64, scratch_operands = 0 : i64, tpu.core_type = #tpu.core_type<tc>, window_params = [{transform_indices = @transform_0, window_bounds = array<i64: 2, 128>}, {pipeline_mode = #tpu.pipeline_mode<synchronous>, transform_indices = @transform_1, window_bounds = array<i64: 128, 8>}, {pipeline_mode = #tpu.pipeline_mode<synchronous>, transform_indices = @transform_2, window_bounds = array<i64: 8, 4>}, {pipeline_mode = #tpu.pipeline_mode<synchronous>, transform_indices = @transform_3, window_bounds = array<i64: 1, 4>}, {pipeline_mode = #tpu.pipeline_mode<synchronous>, transform_indices = @transform_4, window_bounds = array<i64: 4, 8>}, {pipeline_mode = #tpu.pipeline_mode<synchronous>, transform_indices = @transform_5, window_bounds = array<i64: 1, 8>}, {pipeline_mode = #tpu.pipeline_mode<synchronous>, transform_indices = @transform_6, window_bounds = array<i64: 8, 128>}, {transform_indices = @transform_7, window_bounds = array<i64: 2, 128>}, {transform_indices = @transform_8, window_bounds = array<i64: 2, 8>}]} {
    %c0 = arith.constant 0 : index
    %c0_0 = arith.constant 0 : index
    %0 = vector.load %arg1[%c0, %c0_0] : memref<2x128xf32, #tpu.memory_space<vmem>>, vector<2x128xf32>
    %c0_1 = arith.constant 0 : index
    %c0_2 = arith.constant 0 : index
    %1 = vector.load %arg2[%c0_1, %c0_2] : memref<128x8xf32, #tpu.memory_space<vmem>>, vector<128x8xf32>
    %cst = arith.constant dense<0.000000e+00> : vector<2x8xf32>
    %2 = tpu.matmul %0, %1, %cst {dimension_numbers = #tpu.dot_dimension_numbers<[1], [0], [0], [1], [0, 0, 1, 1], [], []>} : vector<2x128xf32>, vector<128x8xf32>, vector<2x8xf32> -> vector<2x8xf32>
    %c0_3 = arith.constant 0 : index
    %c0_4 = arith.constant 0 : index
    %3 = vector.load %arg3[%c0_3, %c0_4] : memref<8x4xf32, #tpu.memory_space<vmem>>, vector<8x4xf32>
    %cst_5 = arith.constant dense<0.000000e+00> : vector<2x4xf32>
    %4 = tpu.matmul %2, %3, %cst_5 {dimension_numbers = #tpu.dot_dimension_numbers<[1], [0], [0], [1], [0, 0, 1, 1], [], []>} : vector<2x8xf32>, vector<8x4xf32>, vector<2x4xf32> -> vector<2x4xf32>
    %c0_6 = arith.constant 0 : index
    %c0_7 = arith.constant 0 : index
    %5 = vector.load %arg4[%c0_6, %c0_7] : memref<1x4xf32, #tpu.memory_space<vmem>>, vector<1x4xf32>
    %6 = vector.broadcast %5 : vector<1x4xf32> to vector<2x4xf32>
    %7 = arith.addf %4, %6 : vector<2x4xf32>
    %cst_8 = arith.constant 0.000000e+00 : f32
    %8 = vector.broadcast %cst_8 : f32 to vector<2x4xf32>
    %9 = arith.maximumf %7, %8 : vector<2x4xf32>
    %c0_9 = arith.constant 0 : index
    %c0_10 = arith.constant 0 : index
    %10 = vector.load %arg5[%c0_9, %c0_10] : memref<4x8xf32, #tpu.memory_space<vmem>>, vector<4x8xf32>
    %cst_11 = arith.constant dense<0.000000e+00> : vector<2x8xf32>
    %11 = tpu.matmul %9, %10, %cst_11 {dimension_numbers = #tpu.dot_dimension_numbers<[1], [0], [0], [1], [0, 0, 1, 1], [], []>} : vector<2x4xf32>, vector<4x8xf32>, vector<2x8xf32> -> vector<2x8xf32>
    %c0_12 = arith.constant 0 : index
    %c0_13 = arith.constant 0 : index
    %12 = vector.load %arg6[%c0_12, %c0_13] : memref<1x8xf32, #tpu.memory_space<vmem>>, vector<1x8xf32>
    %13 = vector.broadcast %12 : vector<1x8xf32> to vector<2x8xf32>
    %14 = arith.addf %11, %13 : vector<2x8xf32>
    %15 = arith.negf %14 : vector<2x8xf32>
    %16 = math.exp %15 : vector<2x8xf32>
    %cst_14 = arith.constant 1.000000e+00 : f32
    %17 = vector.broadcast %cst_14 : f32 to vector<2x8xf32>
    %18 = arith.addf %17, %16 : vector<2x8xf32>
    %19 = arith.divf %17, %18 : vector<2x8xf32>
    %c0_15 = arith.constant 0 : index
    %c0_16 = arith.constant 0 : index
    %20 = vector.load %arg7[%c0_15, %c0_16] : memref<8x128xf32, #tpu.memory_space<vmem>>, vector<8x128xf32>
    %cst_17 = arith.constant dense<0.000000e+00> : vector<2x128xf32>
    %21 = tpu.matmul %19, %20, %cst_17 {dimension_numbers = #tpu.dot_dimension_numbers<[1], [0], [0], [1], [0, 0, 1, 1], [], []>} : vector<2x8xf32>, vector<8x128xf32>, vector<2x128xf32> -> vector<2x128xf32>
    %22 = arith.mulf %0, %21 : vector<2x128xf32>
    %c0_18 = arith.constant 0 : index
    %c0_19 = arith.constant 0 : index
    %23 = vector.load %arg8[%c0_18, %c0_19] : memref<2x128xf32, #tpu.memory_space<vmem>>, vector<2x128xf32>
    tpu.vector_store %arg8[%c0_18, %c0_19], %22 {strides = array<i32>} : memref<2x128xf32, #tpu.memory_space<vmem>>, vector<2x128xf32>,
    %c0_20 = arith.constant 0 : index
    %c0_21 = arith.constant 0 : index
    %24 = vector.load %arg9[%c0_20, %c0_21] : memref<2x8xf32, #tpu.memory_space<vmem>>, vector<2x8xf32>
    tpu.vector_store %arg9[%c0_20, %c0_21], %19 {strides = array<i32>} : memref<2x8xf32, #tpu.memory_space<vmem>>, vector<2x8xf32>,
    return
  }
  func.func @transform_0(%arg0: i32) -> (i32, i32) {
    %c0_i32 = arith.constant 0 : i32
    %c0_i32_0 = arith.constant 0 : i32
    return %arg0, %c0_i32 : i32, i32
  }
  func.func @transform_1(%arg0: i32) -> (i32, i32) {
    %c0_i32 = arith.constant 0 : i32
    %c0_i32_0 = arith.constant 0 : i32
    %c0_i32_1 = arith.constant 0 : i32
    return %c0_i32, %c0_i32_0 : i32, i32
  }
  func.func @transform_2(%arg0: i32) -> (i32, i32) {
    %c0_i32 = arith.constant 0 : i32
    %c0_i32_0 = arith.constant 0 : i32
    %c0_i32_1 = arith.constant 0 : i32
    return %c0_i32, %c0_i32_0 : i32, i32
  }
  func.func @transform_3(%arg0: i32) -> (i32, i32) {
    %c0_i32 = arith.constant 0 : i32
    %c0_i32_0 = arith.constant 0 : i32
    %c0_i32_1 = arith.constant 0 : i32
    return %c0_i32, %c0_i32_0 : i32, i32
  }
  func.func @transform_4(%arg0: i32) -> (i32, i32) {
    %c0_i32 = arith.constant 0 : i32
    %c0_i32_0 = arith.constant 0 : i32
    %c0_i32_1 = arith.constant 0 : i32
    return %c0_i32, %c0_i32_0 : i32, i32
  }
  func.func @transform_5(%arg0: i32) -> (i32, i32) {
    %c0_i32 = arith.constant 0 : i32
    %c0_i32_0 = arith.constant 0 : i32
    %c0_i32_1 = arith.constant 0 : i32
    return %c0_i32, %c0_i32_0 : i32, i32
  }
  func.func @transform_6(%arg0: i32) -> (i32, i32) {
    %c0_i32 = arith.constant 0 : i32
    %c0_i32_0 = arith.constant 0 : i32
    %c0_i32_1 = arith.constant 0 : i32
    return %c0_i32, %c0_i32_0 : i32, i32
  }
  func.func @transform_7(%arg0: i32) -> (i32, i32) {
    %c0_i32 = arith.constant 0 : i32
    %c0_i32_0 = arith.constant 0 : i32
    return %arg0, %c0_i32 : i32, i32
  }
  func.func @transform_8(%arg0: i32) -> (i32, i32) {
    %c0_i32 = arith.constant 0 : i32
    %c0_i32_0 = arith.constant 0 : i32
    return %arg0, %c0_i32 : i32, i32
  }
}

</mosaic_0001>

<llo_original>
// kernel: tpu_custom_call.1
$region0: #{tpu_custom_call.1}
  #allocation0 [shape = 'u32[]', space=smem, size = 0x4, offset = 0x4, fixed_abs, tag = 'smem constant byte address 0x4 - core index']
  #allocation1 [shape = 'u32[72,128]{1,0:T(1,128)}', space=vmem, size = 0x9000, scoped, tag = 'internal scratch']
  %s0 = inlined_call_operand.vmem [shape: f32[2,128], index: 0, kind: input, shape index: {}]
  %s1 = inlined_call_operand.vmem [shape: f32[128,8], index: 1, kind: input, shape index: {}]
  %s2 = inlined_call_operand.vmem [shape: f32[8,4], index: 2, kind: input, shape index: {}]
  %s3 = inlined_call_operand.vmem [shape: f32[1,4], index: 3, kind: input, shape index: {}]
  %s4 = inlined_call_operand.vmem [shape: f32[4,8], index: 4, kind: input, shape index: {}]
  %s5 = inlined_call_operand.vmem [shape: f32[1,8], index: 5, kind: input, shape index: {}]
  %s6 = inlined_call_operand.vmem [shape: f32[8,128], index: 6, kind: input, shape index: {}]
  %s7 = inlined_call_operand.hbm [shape: f32[2,128], index: 7, kind: output, shape index: {0}]
  %s8 = inlined_call_operand.hbm [shape: f32[2,8], index: 8, kind: output, shape index: {1}]
  %9 = xla_tuple %s7, %s8
  %s10 = sld [smem:[#allocation0]]
  $region46: #{tpu_custom_call.1} parent=0
    _
  %s12 = ssub.s32 1, %s10
  %s13 = scalar_select 0, %s12, %s10
  $region1: #{tpu_custom_call.1} parent=0
    #allocation2 [shape = 'u8[1024]{0}', space=vmem, size = 0x400, scoped, tag = 'output window, operand 0, single buffered']
    #allocation3 [shape = 's32[1]{0}', space=sflag, size = 0x4, scoped, tag = 'scoped memory for tpu_custom_call.1']
    #allocation4 [shape = 'u8[1024]{0}', space=vmem, size = 0x400, scoped, tag = 'output window, operand 1, single buffered']
    #allocation5 [shape = 's32[1]{0}', space=sflag, size = 0x4, scoped, tag = 'scoped memory for tpu_custom_call.1']
    %14 = vsyncpa [#allocation3], 0
    %15 = vsyncpa [#allocation5], 0
    // Predicated region
    $region2: #{tpu_custom_call.1} parent=1 // pred_check
      _
    $region3: #{tpu_custom_call.1} parent=1 // pred_check_branch
      %17 = sbr.rel (0) target = $region5
    $region4: #{tpu_custom_call.1} parent=1 // pred_region
      _
    $region5: #{tpu_custom_call.1} parent=1 // pred_fallthru
      _
    // Predicated region
    $region6: #{tpu_custom_call.1} parent=1 // pred_check
      _
    $region7: #{tpu_custom_call.1} parent=1 // pred_check_branch
      %19 = sbr.rel (0) target = $region9
    $region8: #{tpu_custom_call.1} parent=1 // pred_region
      _
    $region9: #{tpu_custom_call.1} parent=1 // pred_fallthru
      _
    // Predicated region
    $region10: #{tpu_custom_call.1} parent=1 // pred_check
      _
    $region11: #{tpu_custom_call.1} parent=1 // pred_check_branch
      %21 = sbr.rel (0) target = $region13
    $region12: #{tpu_custom_call.1} parent=1 // pred_region
      _
    $region13: #{tpu_custom_call.1} parent=1 // pred_fallthru
      _
    // Predicated region
    $region14: #{tpu_custom_call.1} parent=1 // pred_check
      _
    $region15: #{tpu_custom_call.1} parent=1 // pred_check_branch
      %23 = sbr.rel (0) target = $region17
    $region16: #{tpu_custom_call.1} parent=1 // pred_region
      _
    $region17: #{tpu_custom_call.1} parent=1 // pred_fallthru
      _
    // Predicated region
    $region18: #{tpu_custom_call.1} parent=1 // pred_check
      _
    $region19: #{tpu_custom_call.1} parent=1 // pred_check_branch
      %25 = sbr.rel (0) target = $region21
    $region20: #{tpu_custom_call.1} parent=1 // pred_region
      _
    $region21: #{tpu_custom_call.1} parent=1 // pred_fallthru
      _
    // Predicated region
    $region22: #{tpu_custom_call.1} parent=1 // pred_check
      _
    $region23: #{tpu_custom_call.1} parent=1 // pred_check_branch
      %27 = sbr.rel (0) target = $region25
    $region24: #{tpu_custom_call.1} parent=1 // pred_region
      _
    $region25: #{tpu_custom_call.1} parent=1 // pred_fallthru
      _
    // Predicated region
    $region26: #{tpu_custom_call.1} parent=1 // pred_check
      _
    $region27: #{tpu_custom_call.1} parent=1 // pred_check_branch
      %29 = sbr.rel (0) target = $region29
    $region28: #{tpu_custom_call.1} parent=1 // pred_region
      _
    $region29: #{tpu_custom_call.1} parent=1 // pred_fallthru
      _
    %v30 = vld [vmem:[%s0] sm:$0x3]
    %v31 = vld [vmem:[%s1] sm:$0xff]
    %v32 = vld [vmem:[%s1 + $0x8] sm:$0xff]
    %v33 = vld [vmem:[%s1 + $0x10] sm:$0xff]
    %v34 = vld [vmem:[%s1 + $0x18] sm:$0xff]
    %v35 = vld [vmem:[%s1 + $0x20] sm:$0xff]
    %v36 = vld [vmem:[%s1 + $0x28] sm:$0xff]
    %v37 = vld [vmem:[%s1 + $0x30] sm:$0xff]
    %v38 = vld [vmem:[%s1 + $0x38] sm:$0xff]
    %v39 = vld [vmem:[%s1 + $0x40] sm:$0xff]
    %v40 = vld [vmem:[%s1 + $0x48] sm:$0xff]
    %v41 = vld [vmem:[%s1 + $0x50] sm:$0xff]
    %v42 = vld [vmem:[%s1 + $0x58] sm:$0xff]
    %v43 = vld [vmem:[%s1 + $0x60] sm:$0xff]
    %v44 = vld [vmem:[%s1 + $0x68] sm:$0xff]
    %v45 = vld [vmem:[%s1 + $0x70] sm:$0xff]
    %v46 = vld [vmem:[%s1 + $0x78] sm:$0xff]
    %47 = vmatpush.msra.mxu0 %v46
    %48 = vmatpush.msra.mxu0 %v45
    %49 = vmatpush.msra.mxu0 %v44
    %50 = vmatpush.msra.mxu0 %v43
    %51 = vmatpush.msra.mxu0 %v42
    %52 = vmatpush.msra.mxu0 %v41
    %53 = vmatpush.msra.mxu0 %v40
    %54 = vmatpush.msra.mxu0 %v39
    %55 = vmatpush.msra.mxu0 %v38
    %56 = vmatpush.msra.mxu0 %v37
    %57 = vmatpush.msra.mxu0 %v36
    %58 = vmatpush.msra.mxu0 %v35
    %59 = vmatpush.msra.mxu0 %v34
    %60 = vmatpush.msra.mxu0 %v33
    %61 = vmatpush.msra.mxu0 %v32
    %62 = vmatpush.msra.mxu0 %v31
    %63 = vmatmul.f32.gmra.mxu0 %v30
    %v64 = vpop.f32.mrf.mxu0
    %v65 = vadd.f32 0.0, %v64
    %66 = vdwg.mxu0
    %v67 = vld [vmem:[%s2] sm:$0xff]
    %v68 = vld [vmem:[%s3] sm:$0x1]
    %v70 = vperm.slane %v68, 0
    %vm72 = vcmask 64512
    %v74 = vsel %vm72, %v65, 0
    %76 = vmatpush.msra.mxu0 0.0
    %77 = vmatpush.msra.mxu0 0.0
    %78 = vmatpush.msra.mxu0 0.0
    %79 = vmatpush.msra.mxu0 0.0
    %80 = vmatpush.msra.mxu0 0.0
    %81 = vmatpush.msra.mxu0 0.0
    %82 = vmatpush.msra.mxu0 0.0
    %83 = vmatpush.msra.mxu0 0.0
    %84 = vmatpush.msra.mxu0 0.0
    %85 = vmatpush.msra.mxu0 0.0
    %86 = vmatpush.msra.mxu0 0.0
    %87 = vmatpush.msra.mxu0 0.0
    %88 = vmatpush.msra.mxu0 0.0
    %89 = vmatpush.msra.mxu0 0.0
    %90 = vmatpush.msra.mxu0 0.0
    %91 = vmatpush.msra.mxu0 %v67
    %92 = vmatmul.f32.gmra.mxu0 %v74
    %v93 = vpop.f32.mrf.mxu0
    %v94 = vadd.f32 %v70, %v93
    %95 = vdwg.mxu0
    %v96 = vmax.f32 %v94, 0.0
    %v97 = vld [vmem:[%s4] sm:$0xf]
    %v98 = vld [vmem:[%s5] sm:$0x1]
    %v100 = vperm.slane %v98, 0
    %vm102 = vcmask 31744
    %v104 = vsel %vm102, %v96, 0
    %vm106 = vcmask 1043456
    %v108 = vsel %vm106, %v97, 0
    %110 = vmatpush.msra.mxu0 0.0
    %111 = vmatpush.msra.mxu0 0.0
    %112 = vmatpush.msra.mxu0 0.0
    %113 = vmatpush.msra.mxu0 0.0
    %114 = vmatpush.msra.mxu0 0.0
    %115 = vmatpush.msra.mxu0 0.0
    %116 = vmatpush.msra.mxu0 0.0
    %117 = vmatpush.msra.mxu0 0.0
    %118 = vmatpush.msra.mxu0 0.0
    %119 = vmatpush.msra.mxu0 0.0
    %120 = vmatpush.msra.mxu0 0.0
    %121 = vmatpush.msra.mxu0 0.0
    %122 = vmatpush.msra.mxu0 0.0
    %123 = vmatpush.msra.mxu0 0.0
    %124 = vmatpush.msra.mxu0 0.0
    %125 = vmatpush.msra.mxu0 %v108
    %126 = vmatmul.f32.gmra.mxu0 %v104
    %v127 = vpop.f32.mrf.mxu0
    %v128 = vadd.f32 %v100, %v127
    %129 = vdwg.mxu0
    %v130 = vxor.u32 %v128, 2147483648
    %v131 = vmul.f32 %v130, 1.442695
    %v132 = vpow.pop %v131
    %v133 = vadd.f32 %v132, 1.0
    %v134 = vrcp.pop %v133
    %v135 = vmul.f32 %v133, %v134
    %v136 = vsub.f32 1.0, %v135
    %v137 = vmul.f32 %v134, %v136
    %v138 = vadd.f32 %v134, %v137
    %vm139 = vweird.f32 %v133
    %vm140 = vweird.f32 %v134
    %vm141 = vmor %vm139, %vm140
    %v142 = vsel %vm141, %v134, %v138
    %v143 = vand.u32 2147483647, %v133
    %vm144 = vcmp.eq.f32.partialorder %v143, 8.507059e+37
    %v145 = vand.u32 %v133, 2147483648
    %v146 = vor.u32 1.1754944e-38, %v145
    %v147 = vsel %vm144, %v146, %v142
    %v148 = vmul.f32 1.0, %v147
    %v149 = vld [vmem:[%s6] sm:$0xff]
    %v151 = vsel %vm72, %v148, 0
    %153 = vmatpush.msra.mxu0 0.0
    %154 = vmatpush.msra.mxu0 0.0
    %155 = vmatpush.msra.mxu0 0.0
    %156 = vmatpush.msra.mxu0 0.0
    %157 = vmatpush.msra.mxu0 0.0
    %158 = vmatpush.msra.mxu0 0.0
    %159 = vmatpush.msra.mxu0 0.0
    %160 = vmatpush.msra.mxu0 0.0
    %161 = vmatpush.msra.mxu0 0.0
    %162 = vmatpush.msra.mxu0 0.0
    %163 = vmatpush.msra.mxu0 0.0
    %164 = vmatpush.msra.mxu0 0.0
    %165 = vmatpush.msra.mxu0 0.0
    %166 = vmatpush.msra.mxu0 0.0
    %167 = vmatpush.msra.mxu0 0.0
    %168 = vmatpush.msra.mxu0 %v149
    %169 = vmatmul.f32.gmra.mxu0 %v151
    %v170 = vpop.f32.mrf.mxu0
    %v171 = vadd.f32 0.0, %v170
    %172 = vdwg.mxu0
    %v173 = vmul.f32 %v30, %v171
    %174 = vst [vmem:[#allocation2] sm:$0x3] %v173
    %vm175 = vcmask 58368
    %176 = vst.msk [vmem:[#allocation4] sm:$0x3] %vm175, %v148
    // Predicated region
    $region30: #{tpu_custom_call.1} parent=1 // pred_check
      _
    $region31: #{tpu_custom_call.1} parent=1 // pred_check_branch
      %178 = sbr.rel (0) target = $region33
    $region32: #{tpu_custom_call.1} parent=1 // pred_region
      %180 = vsyncadd [#allocation3], 0
      %s182 = sshll.u32 [#allocation2], 4
      %s183 = int_to_ptr.vmem [resolvable:$true] %s182
      %s184 = sshll.u32 %s7, 4
      %s185 = int_to_ptr.hbm [resolvable:$true] %s184
      %187 = dma.vmem_to_hbm [thread:$0]  %s183, 32, %s185, [#allocation3]
    $region33: #{tpu_custom_call.1} parent=1 // pred_fallthru
      _
    // Predicated region
    $region34: #{tpu_custom_call.1} parent=1 // pred_check
      _
    $region35: #{tpu_custom_call.1} parent=1 // pred_check_branch
      %189 = sbr.rel (0) target = $region37
    $region36: #{tpu_custom_call.1} parent=1 // pred_region
      %191 = vsyncadd [#allocation5], 0
      %s193 = sshll.u32 [#allocation4], 4
      %s194 = int_to_ptr.vmem [resolvable:$true] %s193
      %s195 = sshll.u32 %s8, 4
      %s196 = int_to_ptr.hbm [resolvable:$true] %s195
      %198 = dma.vmem_to_hbm [thread:$0]  %s194, 32, %s196, [#allocation5]
    $region37: #{tpu_custom_call.1} parent=1 // pred_fallthru
      _
    // Predicated region
    $region38: #{tpu_custom_call.1} parent=1 // pred_check
      _
    $region39: #{tpu_custom_call.1} parent=1 // pred_check_branch
      %200 = sbr.rel (0) target = $region41
    $region40: #{tpu_custom_call.1} parent=1 // pred_region
      %202 = dma.done [#allocation3], 32
    $region41: #{tpu_custom_call.1} parent=1 // pred_fallthru
      _
    // Predicated region
    $region42: #{tpu_custom_call.1} parent=1 // pred_check
      _
    $region43: #{tpu_custom_call.1} parent=1 // pred_check_branch
      %204 = sbr.rel (0) target = $region45
    $region44: #{tpu_custom_call.1} parent=1 // pred_region
      %206 = dma.done [#allocation5], 32
    $region45: #{tpu_custom_call.1} parent=1 // pred_fallthru
      _
    %207 = vsyncpa [#allocation3], 1
    %208 = vsyncpa [#allocation5], 1

</llo_original>
